<compile_context>
chip_gen: v5e
topology: v5e:2x2
jax: 0.10.0
libtpu: 0.0.40
codegen_flags: <defaults>
</compile_context>

<pallas_src>
import math
import functools

import jax
import jax.numpy as jnp
from jax import lax
from jax.experimental import pallas as pl
from jax.experimental.pallas import tpu as pltpu


def _lfpe_kernel(w_ref, phase_ref, x_ref, o_ref, pe_ref, *, xscale, pe_scale, seq_tile):
    # w_ref:     VMEM (1, d)        f32   (w_r tiled to full width)
    # phase_ref: VMEM (1, d)        f32   (+pi/2 on the cos half, 0 on the sin half)
    # x_ref:     VMEM (TN, d)             (batch dim squeezed)
    # o_ref:     VMEM (TN, d)
    # pe_ref:    VMEM scratch (TN, d) f32 (pos-enc for this seq tile, reused over batch)
    si = pl.program_id(0)   # sequence-tile index (outer, "parallel")
    bi = pl.program_id(1)   # batch index (inner, "arbitrary")

    # Compute the pos-enc tile only once per sequence tile (batch == 0).
    @pl.when(bi == 0)
    def _():
        row = lax.broadcasted_iota(jnp.int32, pe_ref.shape, 0)
        pos = (row + si * seq_tile).astype(jnp.float32)
        # [cos(t*w), sin(t*w)] == sin(t*[w, w] + [pi/2, 0]); single transcendental,
        # no lane-axis concat.
        pe_ref[...] = jnp.sin(pos * w_ref[...] + phase_ref[...]) * pe_scale

    xf = x_ref[...].astype(jnp.float32)
    if xscale != 1.0:            # trace-time constant; skip the mul when scale is 1
        xf = xf * xscale
    o_ref[...] = (xf + pe_ref[...]).astype(o_ref.dtype)


def _pick_seq_tile(n, d, itemsize, target_bytes):
    """Largest multiple-of-8 row count dividing n with a block <= target_bytes."""
    max_rows = max(8, target_bytes // max(1, d * itemsize))
    if n <= max_rows:
        return n
    t = int(max_rows) - int(max_rows) % 8
    while t >= 8:
        if n % t == 0:
            return t
        t -= 8
    return n  # fallback: full sequence (always a legal block)


def learnable_fourier_pos_enc(x, w_r, *, xscale=1.0, seq_tile=None,
                              target_block_bytes=2 << 20):
    """out = x * xscale + cat(cos(t*w_r), sin(t*w_r), -1) / sqrt(d).

    x:   (b, n, d)   float32 or bfloat16
    w_r: (1, d//2)   float32 learnable Fourier frequencies
    """
    b, n, d = x.shape
    d_half = w_r.shape[-1]
    assert d == 2 * d_half, "d_model must equal 2 * w_r width"

    if seq_tile is None:
        seq_tile = _pick_seq_tile(n, d, x.dtype.itemsize, target_block_bytes)
    assert n % seq_tile == 0 and (seq_tile % 8 == 0 or seq_tile == n), \
        "seq tile must divide n and be a multiple of 8 (or the full sequence)"

    # Fold the cos|sin halves into a single sin over d lanes (phase trick).
    w_flat = w_r.reshape(1, d_half).astype(jnp.float32)
    w_full = jnp.concatenate([w_flat, w_flat], axis=-1)                      # (1, d)
    phase = jnp.concatenate(
        [jnp.full((1, d_half), jnp.pi / 2, dtype=jnp.float32),
         jnp.zeros((1, d_half), dtype=jnp.float32)], axis=-1)                # (1, d)
    pe_scale = 1.0 / math.sqrt(d)

    kernel = functools.partial(
        _lfpe_kernel, xscale=float(xscale), pe_scale=float(pe_scale),
        seq_tile=int(seq_tile))

    # Explicit VMEM budget with headroom: x + o double-buffered, f32 pe scratch,
    # tiny param tiles.  Kept well under the v7x 64 MiB physical VMEM.
    block_bytes = seq_tile * d * x.dtype.itemsize
    needed = 4 * block_bytes + seq_tile * d * 4 + 8 * d * 4
    vmem_limit = int(min(max(2 * needed + (1 << 20), 16 << 20), 48 << 20))

    return pl.pallas_call(
        kernel,
        out_shape=jax.ShapeDtypeStruct((b, n, d), x.dtype),
        grid=(n // seq_tile, b),
        in_specs=[
            pl.BlockSpec((1, d), lambda si, bi: (0, 0)),                     # w_full
            pl.BlockSpec((1, d), lambda si, bi: (0, 0)),                     # phase
            pl.BlockSpec((pl.Squeezed(), seq_tile, d),
                         lambda si, bi: (bi, si, 0)),                        # x tile
        ],
        out_specs=pl.BlockSpec((pl.Squeezed(), seq_tile, d),
                               lambda si, bi: (bi, si, 0)),
        scratch_shapes=[pltpu.VMEM((seq_tile, d), jnp.float32)],
        compiler_params=pltpu.CompilerParams(
            dimension_semantics=("parallel", "arbitrary"),
            vmem_limit_bytes=vmem_limit),
    )(w_full, phase, x)


if __name__ == "__main__":
    key = jax.random.PRNGKey(0)
    kx, kw = jax.random.split(key)

    b, n, d_model = 2, 16, 32
    gamma = 1.0
    xscale = 1.0                      # apply_scaling=False (module default)

    x = jax.random.normal(kx, (b, n, d_model), dtype=jnp.float32)
    # w_r ~ N(0, 1/sqrt(gamma)) as in module._reset()
    w_r = jax.random.normal(kw, (1, d_model // 2), dtype=jnp.float32) / math.sqrt(gamma)

    # seq_tile=8 -> grid (2 seq tiles, 2 batches): exercises seq tiling,
    # the iota position offset, and the pl.when pos-enc hoist.
    out = learnable_fourier_pos_enc(x, w_r, xscale=xscale, seq_tile=8)
    jax.block_until_ready(out)

    # Pure-JAX reference for the module's default-path forward.
    t = jnp.arange(n, dtype=jnp.float32)[:, None]                            # (n, 1)
    proj = t * w_r                                                           # (n, d/2)
    pos_enc = jnp.concatenate([jnp.cos(proj), jnp.sin(proj)], axis=-1) / math.sqrt(d_model)
    ref = x * xscale + pos_enc[None]

    assert out.shape == (b, n, d_model)
    max_err = jnp.max(jnp.abs(out - ref))
    assert jnp.allclose(out, ref, atol=2e-5), f"kernel mismatch, max err {max_err}"
    print("KERNEL_OK")
</pallas_src>

<mosaic_0001>
module attributes {stable_mosaic.version = 11 : i64} {
  func.func @_lfpe_kernel(%arg0: i32, %arg1: i32, %arg2: memref<1x32xf32, #tpu.memory_space<vmem>>, %arg3: memref<1x32xf32, #tpu.memory_space<vmem>>, %arg4: memref<1x8x32xf32, #tpu.memory_space<vmem>>, %arg5: memref<1x8x32xf32, #tpu.memory_space<vmem>>, %arg6: memref<8x32xf32, #tpu.memory_space<vmem>>) attributes {dimension_semantics = [#tpu.dimension_semantics<parallel>, #tpu.dimension_semantics<arbitrary>], iteration_bounds = array<i64: 2, 2>, scalar_prefetch = 0 : i64, scratch_operands = 1 : i64, tpu.core_type = #tpu.core_type<tc>, window_params = [{pipeline_mode = #tpu.pipeline_mode<synchronous>, transform_indices = @transform_0, window_bounds = array<i64: 1, 32>}, {pipeline_mode = #tpu.pipeline_mode<synchronous>, transform_indices = @transform_1, window_bounds = array<i64: 1, 32>}, {transform_indices = @transform_2, window_bounds = array<i64: 1, 8, 32>}, {transform_indices = @transform_3, window_bounds = array<i64: 1, 8, 32>}]} {
    %c0_i32 = arith.constant 0 : i32
    %0 = arith.cmpi eq, %arg1, %c0_i32 : i32
    %1 = arith.extui %0 : i1 to i32
    %c0_i32_0 = arith.constant 0 : i32
    %2 = arith.cmpi ne, %1, %c0_i32_0 : i32
    scf.if %2 {
      %10 = tpu.iota {dimensions = array<i32: 0>} : vector<8x32xi32>
      %c8_i32 = arith.constant 8 : i32
      %11 = arith.muli %arg0, %c8_i32 : i32
      %12 = vector.broadcast %11 : i32 to vector<8x32xi32>
      %13 = arith.addi %10, %12 : vector<8x32xi32>
      %14 = arith.sitofp %13 : vector<8x32xi32> to vector<8x32xf32>
      %c0_8 = arith.constant 0 : index
      %c0_9 = arith.constant 0 : index
      %15 = vector.load %arg2[%c0_8, %c0_9] : memref<1x32xf32, #tpu.memory_space<vmem>>, vector<1x32xf32>
      %16 = vector.broadcast %15 : vector<1x32xf32> to vector<8x32xf32>
      %17 = arith.mulf %14, %16 : vector<8x32xf32>
      %c0_10 = arith.constant 0 : index
      %c0_11 = arith.constant 0 : index
      %18 = vector.load %arg3[%c0_10, %c0_11] : memref<1x32xf32, #tpu.memory_space<vmem>>, vector<1x32xf32>
      %19 = vector.broadcast %18 : vector<1x32xf32> to vector<8x32xf32>
      %20 = arith.addf %17, %19 : vector<8x32xf32>
      %21 = math.sin %20 : vector<8x32xf32>
      %cst = arith.constant 0.176776692 : f32
      %22 = vector.broadcast %cst : f32 to vector<8x32xf32>
      %23 = arith.mulf %21, %22 : vector<8x32xf32>
      %c0_12 = arith.constant 0 : index
      %c0_13 = arith.constant 0 : index
      %24 = vector.load %arg6[%c0_12, %c0_13] : memref<8x32xf32, #tpu.memory_space<vmem>>, vector<8x32xf32>
      tpu.vector_store %arg6[%c0_12, %c0_13], %23 {strides = array<i32>} : memref<8x32xf32, #tpu.memory_space<vmem>>, vector<8x32xf32>,
    } else {
    }
    %c0 = arith.constant 0 : index
    %c0_1 = arith.constant 0 : index
    %c0_2 = arith.constant 0 : index
    %3 = vector.load %arg4[%c0, %c0_1, %c0_2] : memref<1x8x32xf32, #tpu.memory_space<vmem>>, vector<1x8x32xf32>
    %4 = vector.shape_cast %3 : vector<1x8x32xf32> to vector<8x32xf32>
    %c0_3 = arith.constant 0 : index
    %c0_4 = arith.constant 0 : index
    %5 = vector.load %arg6[%c0_3, %c0_4] : memref<8x32xf32, #tpu.memory_space<vmem>>, vector<8x32xf32>
    %6 = arith.addf %4, %5 : vector<8x32xf32>
    %c0_5 = arith.constant 0 : index
    %c0_6 = arith.constant 0 : index
    %c0_7 = arith.constant 0 : index
    %7 = vector.load %arg5[%c0_5, %c0_6, %c0_7] : memref<1x8x32xf32, #tpu.memory_space<vmem>>, vector<1x8x32xf32>
    %8 = vector.shape_cast %7 : vector<1x8x32xf32> to vector<8x32xf32>
    %9 = vector.shape_cast %6 : vector<8x32xf32> to vector<1x8x32xf32>
    tpu.vector_store %arg5[%c0_5, %c0_6, %c0_7], %9 {strides = array<i32>} : memref<1x8x32xf32, #tpu.memory_space<vmem>>, vector<1x8x32xf32>,
    return
  }
  func.func @transform_0(%arg0: i32, %arg1: i32) -> (i32, i32) {
    %c0_i32 = arith.constant 0 : i32
    %c0_i32_0 = arith.constant 0 : i32
    %c0_i32_1 = arith.constant 0 : i32
    return %c0_i32, %c0_i32_0 : i32, i32
  }
  func.func @transform_1(%arg0: i32, %arg1: i32) -> (i32, i32) {
    %c0_i32 = arith.constant 0 : i32
    %c0_i32_0 = arith.constant 0 : i32
    %c0_i32_1 = arith.constant 0 : i32
    return %c0_i32, %c0_i32_0 : i32, i32
  }
  func.func @transform_2(%arg0: i32, %arg1: i32) -> (i32, i32, i32) {
    %c0_i32 = arith.constant 0 : i32
    %c0_i32_0 = arith.constant 0 : i32
    return %arg1, %arg0, %c0_i32 : i32, i32, i32
  }
  func.func @transform_3(%arg0: i32, %arg1: i32) -> (i32, i32, i32) {
    %c0_i32 = arith.constant 0 : i32
    %c0_i32_0 = arith.constant 0 : i32
    return %arg1, %arg0, %c0_i32 : i32, i32, i32
  }
}

</mosaic_0001>

<llo_original>
// kernel: tpu_custom_call.1
$region0: #{tpu_custom_call.1}
  #allocation0 [shape = 'u32[]', space=smem, size = 0x4, offset = 0x4, fixed_abs, tag = 'smem constant byte address 0x4 - core index']
  #allocation1 [shape = 'u32[72,128]{1,0:T(1,128)}', space=vmem, size = 0x9000, scoped, tag = 'internal scratch']
  #allocation2 [shape = 'f32[8,32]{1,0:T(8,128)}', space=vmem, size = 0x1000, scoped, tag = 'scratch operand']
  %s0 = inlined_call_operand.hbm [shape: f32[1,32], index: 0, kind: input, shape index: {}]
  %s1 = inlined_call_operand.hbm [shape: f32[1,32], index: 1, kind: input, shape index: {}]
  %s2 = inlined_call_operand.hbm [shape: f32[2,16,32], index: 2, kind: input, shape index: {}]
  %s3 = inlined_call_operand.hbm [shape: f32[2,16,32], index: 3, kind: output, shape index: {}]
  %s4 = sld [smem:[#allocation0]]
  $region61: #{tpu_custom_call.1} parent=0
    _
  %s6 = ssub.s32 1, %s4
  %s7 = scalar_select 0, %s6, %s4
  $region1: #{tpu_custom_call.1} parent=0
    #allocation3 [shape = 'u8[512]{0}', space=vmem, size = 0x400, scoped, tag = 'input window, operand 0, single buffered']
    #allocation4 [shape = 's32[2]{0}', space=sflag, size = 0x8, scoped, tag = 'scoped memory for tpu_custom_call.1']
    #allocation5 [shape = 's32[2]{0}', space=sflag, size = 0x8, scoped, tag = 'scoped memory for tpu_custom_call.1']
    #allocation6 [shape = 'u8[512]{0}', space=vmem, size = 0x400, scoped, tag = 'input window, operand 1, single buffered']
    #allocation7 [shape = 's32[1]{0}', space=sflag, size = 0x4, scoped, tag = 'scoped memory for tpu_custom_call.1']
    #allocation8 [shape = 'u8[8192]{0}', space=vmem, size = 0x2000, scoped, tag = 'input window, operand 2']
    #allocation9 [shape = 'u8[8192]{0}', space=vmem, size = 0x2000, scoped, tag = 'output window, operand 0']
    %8 = vsyncpa [#allocation4], 0
    %9 = vsyncpa [#allocation7], 0
    %10 = vsyncpa [#allocation5], 0
    %s11 = scalar_lea.sflag [#allocation5], 1
    %12 = vsyncpa %s11, 0
    loop: start=0, step=1, limit=6
    $region2: #{tpu_custom_call.1} parent=1 // loop_pre_header
      _
    $region3: #{tpu_custom_call.1} parent=1 // loop_header
      %s14 = sphi 0, %s18
      %p15 = scmp.ge.s32.totalorder %s14, 6
      %s21 = sphi 0, %s33
      %s22 = sphi 0, %s29
      %s23 = sphi 0, %s21
      %s24 = sphi 0, %s22
      %s25 = sphi 0, %s23
      %s26 = sphi 0, %s24
      %s34 = sphi 0, %s34
      %s36 = sphi 0, %s34
      %s37 = sphi 0, %s36
      %s51 = sphi 0, %s37
      %s55 = sphi 0, %s55
      %s57 = sphi 0, %s55
      %s58 = sphi 0, %s57
      %s72 = sphi 0, %s58
      %s80 = sphi 0, %s82
      %s83 = sphi 0, %s80
      %s84 = sphi 0, %s83
      %s100 = sphi 0, %s84
      %s108 = sphi 0, %s110
      %s111 = sphi 0, %s108
      %s112 = sphi 0, %s111
      %s128 = sphi 0, %s112
    $region4: #{tpu_custom_call.1} parent=1 // loop_header_branch
      %17 = sbr.rel (%p15) target = $region8
    $region5: #{tpu_custom_call.1} parent=1 // loop_body
      %s19 = ssub.s32 %s14, 1
      %s20 = ssub.s32 %s14, 2
      %s27 = sadd.s32 1, %s22
      %p28 = scmp.ge.s32.totalorder %s27, 2
      %s29 = scalar_select %p28, 0, %s27
      %s30 = sadd.s32 1, %s21
      %s31 = scalar_select %p28, %s30, %s21
      %p32 = scmp.ge.s32.totalorder %s31, 2
      %s33 = scalar_select %p32, 0, %s31
      %s35 = sadd.s32 %s34, 1
      %p38 = scmp.eq.s32.totalorder %s14, 3
      %p39 = scmp.ne.s32.totalorder %s34, %s36
      %p40 = scmp.eq.s32.totalorder %s14, 0
      %p41 = por %p39, %p40
      %p42 = scmp.ne.s32.totalorder %s34, %s36
      %p43 = scmp.eq.s32.totalorder %s19, 3
      %p44 = por %p42, %p43
      %p45 = scmp.ne.s32.totalorder %s36, %s37
      %p46 = scmp.eq.s32.totalorder %s19, 0
      %p47 = por %p45, %p46
      %p48 = scmp.ne.s32.totalorder %s36, %s37
      %p49 = scmp.eq.s32.totalorder %s20, 3
      %p50 = por %p48, %p49
      %p52 = scmp.ne.s32.totalorder %s37, %s51
      %p53 = scmp.eq.s32.totalorder %s20, 0
      %p54 = por %p52, %p53
      %s56 = sadd.s32 %s55, 1
      %p59 = scmp.eq.s32.totalorder %s14, 3
      %p60 = scmp.ne.s32.totalorder %s55, %s57
      %p61 = scmp.eq.s32.totalorder %s14, 0
      %p62 = por %p60, %p61
      %p63 = scmp.ne.s32.totalorder %s55, %s57
      %p64 = scmp.eq.s32.totalorder %s19, 3
      %p65 = por %p63, %p64
      %p66 = scmp.ne.s32.totalorder %s57, %s58
      %p67 = scmp.eq.s32.totalorder %s19, 0
      %p68 = por %p66, %p67
      %p69 = scmp.ne.s32.totalorder %s57, %s58
      %p70 = scmp.eq.s32.totalorder %s20, 3
      %p71 = por %p69, %p70
      %p73 = scmp.ne.s32.totalorder %s58, %s72
      %p74 = scmp.eq.s32.totalorder %s20, 0
      %p75 = por %p73, %p74
      %s76 = ssub.s32 %s22, %s29
      %s77 = ssub.s32 %s21, %s33
      %s78 = sor.u32 %s76, %s77
      %p79 = scmp.eq.s32.totalorder %s78, 0
      %s81 = sadd.s32 %s80, 1
      %s82 = scalar_select %p79, %s80, %s81
      %p85 = pneg %p79
      %p86 = scmp.eq.s32.totalorder %s14, 3
      %p87 = por %p85, %p86
      %p88 = scmp.ne.s32.totalorder %s80, %s83
      %p89 = scmp.eq.s32.totalorder %s14, 0
      %p90 = por %p88, %p89
      %p91 = scmp.ne.s32.totalorder %s80, %s83
      %p92 = scmp.eq.s32.totalorder %s19, 3
      %p93 = por %p91, %p92
      %p94 = scmp.ne.s32.totalorder %s83, %s84
      %p95 = scmp.eq.s32.totalorder %s19, 0
      %p96 = por %p94, %p95
      %p97 = scmp.ne.s32.totalorder %s83, %s84
      %p98 = scmp.eq.s32.totalorder %s20, 3
      %p99 = por %p97, %p98
      %p101 = scmp.ne.s32.totalorder %s84, %s100
      %p102 = scmp.eq.s32.totalorder %s20, 0
      %p103 = por %p101, %p102
      %s104 = ssub.s32 %s22, %s29
      %s105 = ssub.s32 %s21, %s33
      %s106 = sor.u32 %s104, %s105
      %p107 = scmp.eq.s32.totalorder %s106, 0
      %s109 = sadd.s32 %s108, 1
      %s110 = scalar_select %p107, %s108, %s109
      %p113 = pneg %p107
      %p114 = scmp.eq.s32.totalorder %s14, 3
      %p115 = por %p113, %p114
      %p116 = scmp.ne.s32.totalorder %s108, %s111
      %p117 = scmp.eq.s32.totalorder %s14, 0
      %p118 = por %p116, %p117
      %p119 = scmp.ne.s32.totalorder %s108, %s111
      %p120 = scmp.eq.s32.totalorder %s19, 3
      %p121 = por %p119, %p120
      %p122 = scmp.ne.s32.totalorder %s111, %s112
      %p123 = scmp.eq.s32.totalorder %s19, 0
      %p124 = por %p122, %p123
      %p125 = scmp.ne.s32.totalorder %s111, %s112
      %p126 = scmp.eq.s32.totalorder %s20, 3
      %p127 = por %p125, %p126
      %p129 = scmp.ne.s32.totalorder %s112, %s128
      %p130 = scmp.eq.s32.totalorder %s20, 0
      %p131 = por %p129, %p130
      %p132 = scmp.le.s32.totalorder 1, %s14
      %p133 = scmp.lt.s32.totalorder %s14, 5
      %p134 = pnand %p132, %p133
      %p135 = pneg %p134
      // Predicated region
      $region9: #{tpu_custom_call.1} parent=5 // pred_check
        _
      $region10: #{tpu_custom_call.1} parent=5 // pred_check_branch
        %137 = sbr.rel (%p134) target = $region12
      $region11: #{tpu_custom_call.1} parent=5 // pred_region
        %s138 = ssub.s32 %s14, 1
        // Predicated region
        $region13: #{tpu_custom_call.1} parent=11 // pred_check
          %p139 = pneg %p47
        $region14: #{tpu_custom_call.1} parent=11 // pred_check_branch
          %141 = sbr.rel (%p139) target = $region16
        $region15: #{tpu_custom_call.1} parent=11 // pred_region
          %143 = vsyncadd [#allocation4], 0
          %s145 = sshll.u32 %s0, 4
          %s146 = int_to_ptr.hbm [resolvable:$true] %s145
          %s147 = sshll.u32 [#allocation3], 4
          %s148 = int_to_ptr.vmem [resolvable:$true] %s147
          %150 = dma.hbm_to_vmem [thread:$0]  %s146, 16, %s148, [#allocation4]
        $region16: #{tpu_custom_call.1} parent=11 // pred_fallthru
          _
        // Predicated region
        $region17: #{tpu_custom_call.1} parent=11 // pred_check
          %p151 = pneg %p68
        $region18: #{tpu_custom_call.1} parent=11 // pred_check_branch
          %153 = sbr.rel (%p151) target = $region20
        $region19: #{tpu_custom_call.1} parent=11 // pred_region
          %155 = vsyncadd [#allocation7], 0
          %s157 = sshll.u32 %s1, 4
          %s158 = int_to_ptr.hbm [resolvable:$true] %s157
          %s159 = sshll.u32 [#allocation6], 4
          %s160 = int_to_ptr.vmem [resolvable:$true] %s159
          %162 = dma.hbm_to_vmem [thread:$0]  %s158, 16, %s160, [#allocation7]
        $region20: #{tpu_custom_call.1} parent=11 // pred_fallthru
          _
      $region12: #{tpu_custom_call.1} parent=5 // pred_fallthru
        _
      %p163 = scmp.lt.s32.totalorder %s14, 4
      // Predicated region
      $region21: #{tpu_custom_call.1} parent=5 // pred_check
        %p164 = pneg %p163
      $region22: #{tpu_custom_call.1} parent=5 // pred_check_branch
        %166 = sbr.rel (%p164) target = $region24
      $region23: #{tpu_custom_call.1} parent=5 // pred_region
        // Predicated region
        $region25: #{tpu_custom_call.1} parent=23 // pred_check
          %p167 = pneg %p90
        $region26: #{tpu_custom_call.1} parent=23 // pred_check_branch
          %169 = sbr.rel (%p167) target = $region28
        $region27: #{tpu_custom_call.1} parent=23 // pred_region
          %s170 = sand.u32 %s14, 1
          %s171 = scalar_lea.sflag [#allocation4], %s170
          %s172 = sand.u32 %s80, 1
          %s173 = smul.addr %s172, 8
          %s174 = scalar_lea.vmem [#allocation8], %s173
          %176 = vsyncadd %s171, 0
          %s177 = smul.addr %s22, 2
          %s178 = sadd.s32 %s21, %s177
          %s179 = smul.addr %s178, 8
          %s180 = scalar_lea.hbm %s2, %s179
          %s182 = sshll.u32 %s180, 4
          %s183 = int_to_ptr.hbm [resolvable:$true] %s182
          %s184 = sshll.u32 %s174, 4
          %s185 = int_to_ptr.vmem [resolvable:$true] %s184
          %187 = dma.hbm_to_vmem [thread:$0]  %s183, 128, %s185, %s171
        $region28: #{tpu_custom_call.1} parent=23 // pred_fallthru
          _
      $region24: #{tpu_custom_call.1} parent=5 // pred_fallthru
        _
      %p188 = scmp.le.s32.totalorder 1, %s14
      %p189 = scmp.lt.s32.totalorder %s14, 5
      %p190 = pnand %p188, %p189
      %p191 = pneg %p190
      // Predicated region
      $region29: #{tpu_custom_call.1} parent=5 // pred_check
        _
      $region30: #{tpu_custom_call.1} parent=5 // pred_check_branch
        %193 = sbr.rel (%p190) target = $region32
      $region31: #{tpu_custom_call.1} parent=5 // pred_region
        %s194 = ssub.s32 %s14, 1
        // Predicated region
        $region33: #{tpu_custom_call.1} parent=31 // pred_check
          %p195 = pneg %p47
        $region34: #{tpu_custom_call.1} parent=31 // pred_check_branch
          %197 = sbr.rel (%p195) target = $region36
        $region35: #{tpu_custom_call.1} parent=31 // pred_region
          %199 = dma.done [#allocation4], 16
        $region36: #{tpu_custom_call.1} parent=31 // pred_fallthru
          _
        // Predicated region
        $region37: #{tpu_custom_call.1} parent=31 // pred_check
          %p200 = pneg %p68
        $region38: #{tpu_custom_call.1} parent=31 // pred_check_branch
          %202 = sbr.rel (%p200) target = $region40
        $region39: #{tpu_custom_call.1} parent=31 // pred_region
          %204 = dma.done [#allocation7], 16
        $region40: #{tpu_custom_call.1} parent=31 // pred_fallthru
          _
        %s205 = sand.u32 %s19, 1
        %s206 = scalar_lea.sflag [#allocation4], %s205
        %s207 = sand.u32 %s83, 1
        %s208 = smul.addr %s207, 8
        %s209 = scalar_lea.vmem [#allocation8], %s208
        // Predicated region
        $region41: #{tpu_custom_call.1} parent=31 // pred_check
          %p210 = pneg %p96
        $region42: #{tpu_custom_call.1} parent=31 // pred_check_branch
          %212 = sbr.rel (%p210) target = $region44
        $region43: #{tpu_custom_call.1} parent=31 // pred_region
          %214 = dma.done %s206, 128
        $region44: #{tpu_custom_call.1} parent=31 // pred_fallthru
          _
        %p215 = pneg %p47
        %p216 = pneg %p44
        %p217 = pneg %p68
        %p218 = pneg %p65
        %s219 = sand.u32 %s19, 1
        %s220 = scalar_lea.sflag [#allocation4], %s219
        %s221 = sand.u32 %s83, 1
        %s222 = smul.addr %s221, 8
        %s223 = scalar_lea.vmem [#allocation8], %s222
        %p224 = pneg %p96
        %p225 = pneg %p93
        %p226 = pneg %p124
        %p227 = pneg %p121
        %s228 = sand.u32 %s111, 1
        %s229 = scalar_lea.sflag [#allocation5], %s228
        %s230 = sand.u32 %s111, 1
        %s231 = smul.addr %s230, 8
        %s232 = scalar_lea.vmem [#allocation9], %s231
        %p233 = scmp.eq.s32.totalorder %s24, 0
        // Predicated region
        $region45: #{tpu_custom_call.1} parent=31 // pred_check
          %p234 = pneg %p233
        $region46: #{tpu_custom_call.1} parent=31 // pred_check_branch
          %236 = sbr.rel (%p234) target = $region48
        $region47: #{tpu_custom_call.1} parent=31 // pred_region
          %v237 = vlaneseq
          %v238 = vshrl.u32 %v237, 7
          %s239 = smul.u32 %s23, 8
          %v240 = vstv %s239
          %v241 = vadd.s32 %v238, %v240
          %v242 = vcvt.s32.f32 %v241
          %v243 = vld [vmem:[#allocation3] sm:$0x1]
          %v245 = vperm.slane %v243, 0
          %v247 = vmul.f32 %v242, %v245
          %v248 = vld [vmem:[#allocation6] sm:$0x1]
          %v250 = vperm.slane %v248, 0
          %v252 = vadd.f32 %v247, %v250
          %v253 = vand.u32 2147483647, %v252
          %vm254 = vcmp.le.f32.partialorder %v253, 0.7853982
          %vm255 = vcmp.lt.s32.totalorder %v252, 0
          %v256 = vand.u32 %v252, 2139095040
          %v257 = vshrl.u32 %v256, 23
          %v258 = vsub.s32 %v257, 127
          %v259 = vand.u32 2147483647, %v252
          %v260 = vand.u32 %v259, 8388607
          %v261 = vor.u32 %v260, 8388608
          %v262 = vsub.s32 0, %v261
          %v263 = vadd.s32 %v258, 1
          %vm264 = vcmp.gt.s32.totalorder %v263, 0
          %v265 = vsel %vm264, %v263, 0
          %v266 = vshrl.u32 %v265, 5
          %v267 = vand.u32 %v265, 31
          %v268 = vsub.s32 32, %v267
          %v269 = vshrl.u32 683565275, %v268
          %v270 = vshll.u32 683565275, %v267
          %v271 = vshrl.u32 2475754826, %v268
          %v272 = vor.u32 %v270, %v271
          %v273 = vshll.u32 2475754826, %v267
          %v274 = vshrl.u32 2131351028, %v268
          %v275 = vor.u32 %v273, %v274
          %v276 = vshll.u32 2131351028, %v267
          %v277 = vshrl.u32 2102212464, %v268
          %v278 = vor.u32 %v276, %v277
          %v279 = vshll.u32 2102212464, %v267
          %v280 = vshrl.u32 920167782, %v268
          %v281 = vor.u32 %v279, %v280
          %v282 = vshll.u32 920167782, %v267
          %v283 = vshrl.u32 1326507024, %v268
          %v284 = vor.u32 %v282, %v283
          %vm285 = vcmp.lt.s32.totalorder %v266, 1
          %vm286 = vcmp.lt.s32.totalorder %v266, 2
          %vm287 = vcmp.lt.s32.totalorder %v266, 3
          %vm288 = vcmp.lt.s32.totalorder %v266, 4
          %v289 = vsel %vm285, %v269, %v272
          %v290 = vsel %vm288, %v278, 2102212464
          %v291 = vsel %vm287, %v275, %v290
          %v292 = vsel %vm286, %v289, %v291
          %v293 = vsel %vm285, %v272, %v275
          %v294 = vsel %vm288, %v281, 920167782
          %v295 = vsel %vm287, %v278, %v294
          %v296 = vsel %vm286, %v293, %v295
          %v297 = vsel %vm285, %v275, %v278
          %v298 = vsel %vm288, %v284, 1326507024
          %v299 = vsel %vm287, %v281, %v298
          %v300 = vsel %vm286, %v297, %v299
          %v301 = vshll.u32 %v261, 8
          %v302 = vand.u32 %v301, 65535
          %v303 = vshrl.u32 %v301, 16
          %v304 = vand.u32 %v300, 65535
          %v305 = vshrl.u32 %v300, 16
          %v306 = vmul.u32 %v302, %v304
          %v307 = vmul.u32 %v302, %v305
          %v308 = vmul.u32 %v303, %v304
          %v309 = vmul.u32 %v303, %v305
          %v310 = vshll.u32 %v307, 16
          %v311 = vshrl.u32 %v307, 16
          %v312 = vshll.u32 %v308, 16
          %v313 = vshrl.u32 %v308, 16
          %vm314 = vc.u32 %v306, %v310
          %v315 = vsel %vm314, 1, 0
          %v316 = vadd.s32 %v306, %v310
          %v317 = vadd.s32 %v309, %v315
          %vm318 = vc.u32 %v316, %v312
          %v319 = vsel %vm318, 1, 0
          %v320 = vadd.s32 %v316, %v312
          %v321 = vadd.s32 %v317, %v319
          %v322 = vadd.s32 %v321, %v311
          %v323 = vadd.s32 %v322, %v313
          %v324 = vand.u32 %v301, 65535
          %v325 = vshrl.u32 %v301, 16
          %v326 = vand.u32 %v296, 65535
          %v327 = vshrl.u32 %v296, 16
          %v328 = vmul.u32 %v324, %v326
          %v329 = vmul.u32 %v324, %v327
          %v330 = vmul.u32 %v325, %v326
          %v331 = vmul.u32 %v325, %v327
          %v332 = vshll.u32 %v329, 16
          %v333 = vshrl.u32 %v329, 16
          %v334 = vshll.u32 %v330, 16
          %v335 = vshrl.u32 %v330, 16
          %vm336 = vc.u32 %v328, %v332
          %v337 = vsel %vm336, 1, 0
          %v338 = vadd.s32 %v328, %v332
          %v339 = vadd.s32 %v331, %v337
          %vm340 = vc.u32 %v338, %v334
          %v341 = vsel %vm340, 1, 0
          %v342 = vadd.s32 %v338, %v334
          %v343 = vadd.s32 %v339, %v341
          %v344 = vadd.s32 %v343, %v333
          %v345 = vadd.s32 %v344, %v335
          %v346 = vmul.u32 %v301, %v292
          %v347 = vadd.s32 %v323, %v342
          %vm348 = vc.u32 %v323, %v342
          %v349 = vadd.s32 %v345, 1
          %v350 = vsel %vm348, %v349, %v345
          %v351 = vadd.s32 %v346, %v350
          %v352 = vadd.s32 %v351, 536870912
          %v353 = vshrl.u32 %v352, 30
          %v354 = vshll.u32 %v353, 30
          %v355 = vsub.s32 %v351, %v354
          %vm356 = vcmp.lt.s32.totalorder %v355, 0
          %v357 = vsub.s32 0, %v355
          %v358 = vsel %vm356, %v357, %v355
          %v359 = vclz %v358
          %v360 = vsub.s32 %v359, 2
          %vm361 = vcmp.gt.s32.totalorder 0, %v360
          %v362 = vsel %vm361, 0, %v360
          %v363 = vsub.s32 32, %v362
          %v364 = vshll.u32 %v355, %v362
          %v365 = vshrl.u32 %v347, %v363
          %v366 = vor.u32 %v364, %v365
          %v367 = vsub.s32 4294967266, %v362
          %v368 = vadd.s32 %v367, 127
          %v369 = vshll.u32 %v368, 23
          %v370 = vor.u32 4788187, %v369
          %v371 = vand.u32 2147483647, %v370
          %v373 = vcvt.s32.f32 %v366
          %v374 = vmul.f32 %v373, %v371
          %v375 = vxor.u32 %v374, 2147483648
          %v376 = vsel %vm255, %v375, %v374
          %v377 = vsub.s32 4, %v353
          %v378 = vsel %vm255, %v377, %v353
          %v379 = vsel %vm254, %v252, %v376
          %v380 = vsel %vm254, 0, %v378
          %v381 = vmul.f32 %v379, %v379
          %v382 = vmul.f32 %v381, -0.001358992
          %v383 = vadd.f32 %v382, 0.041655596
          %v384 = vmul.f32 %v381, %v383
          %v385 = vadd.f32 %v384, -0.4999988
          %v386 = vmul.f32 %v381, %v385
          %v387 = vadd.f32 1.0, %v386
          %v388 = vmul.f32 %v379, %v379
          %v389 = vmul.f32 %v388, -0.00019511016
          %v390 = vadd.f32 %v389, 0.008332121
          %v391 = vmul.f32 %v388, %v390
          %v392 = vadd.f32 %v391, -0.16666654
          %v393 = vmul.f32 %v388, %v392
          %v394 = vadd.f32 %v393, 1.0
          %v395 = vmul.f32 %v394, %v379
          %vm396 = vweird.f32 %v252
          %v397 = vadd.s32 %v380, 3
          %v398 = vand.u32 %v397, 3
          %vm399 = vcmp.lt.s32.totalorder %v398, 2
          %vm400 = vcmp.eq.s32.totalorder %v398, 0
          %v401 = vxor.u32 %v395, 2147483648
          %v402 = vsel %vm400, %v387, %v401
          %vm403 = vcmp.eq.s32.totalorder %v398, 2
          %v404 = vxor.u32 %v387, 2147483648
          %v405 = vsel %vm403, %v404, %v395
          %v406 = vsel %vm399, %v402, %v405
          %v407 = vsel %vm396, nan, %v406
          %v408 = vmul.f32 %v407, 0.17677669
          %vm409 = vcmask 261120
          %410 = vst.msk [vmem:[#allocation2] sm:$0xff] %vm409, %v408
        $region48: #{tpu_custom_call.1} parent=31 // pred_fallthru
          _
        %v411 = vld [vmem:[%s209] sm:$0xff]
        %v412 = vld [vmem:[#allocation2] sm:$0xff]
        %v413 = vadd.f32 %v411, %v412
        %vm414 = vcmask 261120
        %415 = vst.msk [vmem:[%s232] sm:$0xff] %vm414, %v413
        %s416 = sand.u32 %s111, 1
        %s417 = scalar_lea.sflag [#allocation5], %s416
        %s418 = sand.u32 %s111, 1
        %s419 = smul.addr %s418, 8
        %s420 = scalar_lea.vmem [#allocation9], %s419
        // Predicated region
        $region49: #{tpu_custom_call.1} parent=31 // pred_check
          %p421 = pneg %p121
        $region50: #{tpu_custom_call.1} parent=31 // pred_check_branch
          %423 = sbr.rel (%p421) target = $region52
        $region51: #{tpu_custom_call.1} parent=31 // pred_region
          %425 = vsyncadd %s417, 0
          %s426 = smul.addr %s24, 2
          %s427 = sadd.s32 %s23, %s426
          %s428 = smul.addr %s427, 8
          %s429 = scalar_lea.hbm %s3, %s428
          %s431 = sshll.u32 %s420, 4
          %s432 = int_to_ptr.vmem [resolvable:$true] %s431
          %s433 = sshll.u32 %s429, 4
          %s434 = int_to_ptr.hbm [resolvable:$true] %s433
          %436 = dma.vmem_to_hbm [thread:$0]  %s432, 128, %s434, %s417
        $region52: #{tpu_custom_call.1} parent=31 // pred_fallthru
          _
      $region32: #{tpu_custom_call.1} parent=5 // pred_fallthru
        _
      %p437 = scmp.le.s32.totalorder 2, %s14
      // Predicated region
      $region53: #{tpu_custom_call.1} parent=5 // pred_check
        %p438 = pneg %p437
      $region54: #{tpu_custom_call.1} parent=5 // pred_check_branch
        %440 = sbr.rel (%p438) target = $region56
      $region55: #{tpu_custom_call.1} parent=5 // pred_region
        %s441 = ssub.s32 %s14, 2
        // Predicated region
        $region57: #{tpu_custom_call.1} parent=55 // pred_check
          %p442 = pneg %p127
        $region58: #{tpu_custom_call.1} parent=55 // pred_check_branch
          %444 = sbr.rel (%p442) target = $region60
        $region59: #{tpu_custom_call.1} parent=55 // pred_region
          %s445 = sand.u32 %s112, 1
          %s446 = scalar_lea.sflag [#allocation5], %s445
          %s447 = sand.u32 %s112, 1
          %s448 = smul.addr %s447, 8
          %s449 = scalar_lea.vmem [#allocation9], %s448
          %451 = dma.done %s446, 128
        $region60: #{tpu_custom_call.1} parent=55 // pred_fallthru
          _
      $region56: #{tpu_custom_call.1} parent=5 // pred_fallthru
        _
    $region6: #{tpu_custom_call.1} parent=1 // loop_footer
      %s18 = sadd.s32 1, %s14
    $region7: #{tpu_custom_call.1} parent=1 // loop_footer_branch
      %13 = sbr.rel target = $region3
    $region8: #{tpu_custom_call.1} parent=1 // loop_exit
      _
    %452 = vsyncpa [#allocation4], 1
    %s453 = scalar_lea.sflag [#allocation4], 1
    %454 = vsyncpa %s453, 1
    %455 = vsyncpa [#allocation7], 1
    %456 = vsyncpa [#allocation5], 1
    %s457 = scalar_lea.sflag [#allocation5], 1
    %458 = vsyncpa %s457, 1

</llo_original>
